<compile_context>
chip_gen: v5e
topology: v5e:2x2
jax: 0.10.0
libtpu: 0.0.40
codegen_flags: <defaults>
</compile_context>

<pallas_src>
import jax
import jax.numpy as jnp
import numpy as np
from jax.experimental import pallas as pl
from jax.experimental.pallas import tpu as pltpu

B, C_IN, C_OUT, H, W = 2, 8, 16, 16, 16
RED = 8
C_HID = C_OUT // RED          # SE hidden width
HW = H * W
N_LANES = B * HW              # batch folded into lanes (512), batch-major
EPS = 1e-5
K1 = 3 * C_IN                 # conv1 im2col K (24)
K2 = 3 * C_OUT                # conv2 im2col K (48)


def _res_se_kernel(x_ref, w_ref, aux_ref, out_ref):
    # x_ref: (B, C_IN, HW) -> fold batch into lanes (batch-major) -> (C_IN, B*HW)
    x = jnp.concatenate([x_ref[b] for b in range(B)], axis=1)            # (C_IN, 512) f32

    # within-image position h*W + w for every lane (for the H-border masks)
    pos = jax.lax.broadcasted_iota(jnp.int32, (1, N_LANES), 1) % HW

    def taps(a):
        # stack (h-1, h, h+1) row taps on the K axis; zero image borders (and any
        # cross-image / full-array wraparound) via the pos masks.
        up = jnp.where(pos < W, 0.0, pltpu.roll(a, W, axis=1))
        dn = jnp.where(pos >= HW - W, 0.0, pltpu.roll(a, N_LANES - W, axis=1))
        return jnp.concatenate([up, a, dn], axis=0)

    w = w_ref[...]                                                        # (3*C_OUT, K2) bf16
    aux = aux_ref[...]                                                    # (C_OUT, 3+2*C_HID) f32
    t1, t2, td = aux[:, 0:1], aux[:, 1:2], aux[:, 2:3]
    wf1t = aux[:, 3:3 + C_HID]                                            # fc1.weight.T (C_OUT, C_HID)
    wf2 = aux[:, 3 + C_HID:3 + 2 * C_HID]                                 # fc2.weight   (C_OUT, C_HID)

    # ---- fused [conv1(3,1)+bn1 ; downsample 1x1+bn_d]: one MXU matmul, M = 2*C_OUT ----
    xcat = taps(x).astype(jnp.bfloat16)                                   # (K1, 512)
    hd = jnp.dot(w[:2 * C_OUT, :K1], xcat,
                 preferred_element_type=jnp.float32)                      # (2*C_OUT, 512) f32
    h = jnp.maximum(hd[:C_OUT, :] + t1, 0.0)                              # conv1+bn1+relu
    resid = hd[C_OUT:, :] + td                                            # downsample+bn_d

    # ---- conv2 (3,1) + bn2: taps via XLU roll, one bf16 matmul with K = 3*C_OUT ----
    hcat = taps(h).astype(jnp.bfloat16)                                   # (K2, 512)
    o2 = jnp.dot(w[2 * C_OUT:, :], hcat,
                 preferred_element_type=jnp.float32) + t2                 # (C_OUT, 512) f32

    # ---- SE (avg-pool -> fc1 -> relu -> fc2 -> sigmoid) + residual + relu, per image ----
    for b in range(B):                                                    # tiny static unroll
        sl = slice(b * HW, (b + 1) * HW)                                  # 256-lane aligned slice
        o2b = o2[:, sl]
        y = jnp.sum(o2b, axis=1, keepdims=True) * (1.0 / HW)              # (C_OUT, 1)
        z = jnp.maximum(jnp.sum(wf1t * y, axis=0, keepdims=True), 0.0)    # (1, C_HID)
        g = jax.nn.sigmoid(jnp.sum(wf2 * z, axis=1, keepdims=True))       # (C_OUT, 1)
        out_ref[b] = jnp.maximum(o2b * g + resid[:, sl], 0.0).astype(out_ref.dtype)


def residual_se_block(x, p):
    """x: (B, C_IN, H, W) float32 -> (B, C_OUT, H, W) float32."""
    x2 = x.reshape(B, C_IN, HW)                       # free metadata reshape (no transpose)

    out = pl.pallas_call(
        _res_se_kernel,
        out_shape=jax.ShapeDtypeStruct((B, C_OUT, HW), jnp.float32),
        grid_spec=pltpu.PrefetchScalarGridSpec(
            num_scalar_prefetch=0,
            grid=(1,),
            in_specs=[
                pl.BlockSpec((B, C_IN, HW), lambda i: (0, 0, 0)),          # raw input
                pl.BlockSpec((3 * C_OUT, K2), lambda i: (0, 0)),           # packed bf16 conv weights
                pl.BlockSpec((C_OUT, 3 + 2 * C_HID), lambda i: (0, 0)),    # shifts + SE weights
            ],
            out_specs=pl.BlockSpec((B, C_OUT, HW), lambda i: (0, 0, 0)),
        ),
        compiler_params=pltpu.CompilerParams(dimension_semantics=("arbitrary",)),
    )(x2, p['wcat'], p['aux'])
    return out.reshape(B, C_OUT, H, W)                # free metadata reshape


def init_params(key):
    ks = jax.random.split(key, 10)
    conv1_w = 0.1 * jax.random.normal(ks[0], (C_OUT, C_IN, 3, 1), jnp.float32)
    conv1_b = 0.1 * jax.random.normal(ks[1], (C_OUT,), jnp.float32)
    conv2_w = 0.1 * jax.random.normal(ks[2], (C_OUT, C_OUT, 3, 1), jnp.float32)
    conv2_b = 0.1 * jax.random.normal(ks[3], (C_OUT,), jnp.float32)
    dconv_w = 0.1 * jax.random.normal(ks[4], (C_OUT, C_IN, 1, 1), jnp.float32)
    fc1_w = 0.1 * jax.random.normal(ks[5], (C_HID, C_OUT), jnp.float32)
    fc2_w = 0.1 * jax.random.normal(ks[6], (C_OUT, C_HID), jnp.float32)

    def bn_params(k):
        k1, k2, k3, k4 = jax.random.split(k, 4)
        gamma = 1.0 + 0.1 * jax.random.normal(k1, (C_OUT,), jnp.float32)
        beta = 0.1 * jax.random.normal(k2, (C_OUT,), jnp.float32)
        mean = 0.1 * jax.random.normal(k3, (C_OUT,), jnp.float32)
        var = jax.random.uniform(k4, (C_OUT,), jnp.float32, 0.5, 1.5)
        return gamma, beta, mean, var

    bn1, bn2, bnd = bn_params(ks[7]), bn_params(ks[8]), bn_params(ks[9])

    raw = dict(conv1_w=conv1_w, conv1_b=conv1_b, conv2_w=conv2_w, conv2_b=conv2_b,
               dconv_w=dconv_w, fc1_w=fc1_w, fc2_w=fc2_w, bn1=bn1, bn2=bn2, bnd=bnd)

    def fold(bn, bias):
        gamma, beta, mean, var = bn
        scale = gamma / jnp.sqrt(var + EPS)
        shift = beta - mean * scale
        if bias is not None:
            shift = shift + bias * scale
        return scale, shift

    s1, t1 = fold(bn1, conv1_b)
    s2, t2 = fold(bn2, conv2_b)
    sd, td = fold(bnd, None)

    # im2col weight layouts (columns kh-major, channel-minor), BN scales folded in.
    w1col = (s1[:, None, None] * conv1_w[:, :, :, 0]).transpose(0, 2, 1).reshape(C_OUT, K1)
    w2col = (s2[:, None, None] * conv2_w[:, :, :, 0]).transpose(0, 2, 1).reshape(C_OUT, K2)
    wd = sd[:, None] * dconv_w[:, :, 0, 0]                               # (C_OUT, C_IN)

    # one packed bf16 weight slab:
    #   rows [0:C_OUT)        cols [0:K1)            = conv1 (bn1 folded)
    #   rows [C_OUT:2*C_OUT)  cols [C_IN:2*C_IN)     = downsample 1x1 (bn_d folded), centre tap
    #   rows [2*C_OUT:3*C_OUT) cols [0:K2)           = conv2 (bn2 folded)
    wcat = jnp.zeros((3 * C_OUT, K2), jnp.float32)
    wcat = wcat.at[:C_OUT, :K1].set(w1col)
    wcat = wcat.at[C_OUT:2 * C_OUT, C_IN:2 * C_IN].set(wd)
    wcat = wcat.at[2 * C_OUT:, :].set(w2col)
    wcat = wcat.astype(jnp.bfloat16)

    # packed f32 aux: [t1 | t2 | td | fc1.weight.T | fc2.weight]  -> (C_OUT, 3 + 2*C_HID)
    aux = jnp.concatenate([t1[:, None], t2[:, None], td[:, None], fc1_w.T, fc2_w], axis=1)

    return raw, dict(wcat=wcat, aux=aux)


def reference(x, raw):
    """Pure-JAX reference mirroring the PyTorch forward (inference-mode BN)."""
    hi = jax.lax.Precision.HIGHEST

    def conv31(xx, w, b):
        xp = jnp.pad(xx, ((0, 0), (0, 0), (1, 1), (0, 0)))
        out = sum(jnp.einsum('oi,bihw->bohw', w[:, :, kh, 0], xp[:, :, kh:kh + H, :],
                             precision=hi) for kh in range(3))
        return out + b[None, :, None, None]

    def bn(xx, p):
        gamma, beta, mean, var = p
        return ((xx - mean[None, :, None, None])
                / jnp.sqrt(var[None, :, None, None] + EPS)
                * gamma[None, :, None, None] + beta[None, :, None, None])

    out = jax.nn.relu(bn(conv31(x, raw['conv1_w'], raw['conv1_b']), raw['bn1']))
    out = bn(conv31(out, raw['conv2_w'], raw['conv2_b']), raw['bn2'])
    y = out.mean(axis=(2, 3))
    z = jax.nn.relu(y @ raw['fc1_w'].T)
    g = jax.nn.sigmoid(z @ raw['fc2_w'].T)
    out = out * g[:, :, None, None]
    resid = bn(jnp.einsum('oi,bihw->bohw', raw['dconv_w'][:, :, 0, 0], x, precision=hi),
               raw['bnd'])
    return jax.nn.relu(out + resid)


if __name__ == "__main__":
    key = jax.random.PRNGKey(0)
    kx, kp = jax.random.split(key)
    x = jax.random.normal(kx, (B, C_IN, H, W), jnp.float32)
    raw, kparams = init_params(kp)

    out = jax.block_until_ready(residual_se_block(x, kparams))
    assert out.shape == (B, C_OUT, H, W)

    ref = reference(x, raw)
    np.testing.assert_allclose(np.asarray(out), np.asarray(ref), rtol=1e-2, atol=1e-2)
    print("KERNEL_OK")
</pallas_src>

<mosaic_0001>
module attributes {stable_mosaic.version = 11 : i64} {
  func.func @_res_se_kernel(%arg0: i32, %arg1: memref<2x8x256xf32, #tpu.memory_space<vmem>>, %arg2: memref<48x48xbf16, #tpu.memory_space<vmem>>, %arg3: memref<16x7xf32, #tpu.memory_space<vmem>>, %arg4: memref<2x16x256xf32, #tpu.memory_space<vmem>>) attributes {dimension_semantics = [#tpu.dimension_semantics<arbitrary>], iteration_bounds = array<i64: 1>, scalar_prefetch = 0 : i64, scratch_operands = 0 : i64, tpu.core_type = #tpu.core_type<tc>, window_params = [{pipeline_mode = #tpu.pipeline_mode<synchronous>, transform_indices = @transform_0, window_bounds = array<i64: 2, 8, 256>}, {pipeline_mode = #tpu.pipeline_mode<synchronous>, transform_indices = @transform_1, window_bounds = array<i64: 48, 48>}, {pipeline_mode = #tpu.pipeline_mode<synchronous>, transform_indices = @transform_2, window_bounds = array<i64: 16, 7>}, {pipeline_mode = #tpu.pipeline_mode<synchronous>, transform_indices = @transform_3, window_bounds = array<i64: 2, 16, 256>}]} {
    %c0 = arith.constant 0 : index
    %c0_0 = arith.constant 0 : index
    %c0_1 = arith.constant 0 : index
    %0 = vector.load %arg1[%c0, %c0_0, %c0_1] : memref<2x8x256xf32, #tpu.memory_space<vmem>>, vector<1x8x256xf32>
    %1 = vector.shape_cast %0 : vector<1x8x256xf32> to vector<8x256xf32>
    %c1 = arith.constant 1 : index
    %c0_2 = arith.constant 0 : index
    %c0_3 = arith.constant 0 : index
    %2 = vector.load %arg1[%c1, %c0_2, %c0_3] : memref<2x8x256xf32, #tpu.memory_space<vmem>>, vector<1x8x256xf32>
    %3 = vector.shape_cast %2 : vector<1x8x256xf32> to vector<8x256xf32>
    %4 = tpu.concatenate %1, %3 in 1 : vector<8x256xf32>, vector<8x256xf32> -> vector<8x512xf32>
    %5 = tpu.iota {dimensions = array<i32: 1>} : vector<1x512xi32>
    %c256_i32 = arith.constant 256 : i32
    %c0_i32 = arith.constant 0 : i32
    %6 = arith.cmpi eq, %c256_i32, %c0_i32 : i32
    %c1_i32 = arith.constant 1 : i32
    %7 = arith.select %6, %c1_i32, %c256_i32 : i32
    %8 = vector.broadcast %7 : i32 to vector<1x512xi32>
    %9 = arith.remsi %5, %8 : vector<1x512xi32>
    %c0_i32_4 = arith.constant 0 : i32
    %10 = vector.broadcast %c0_i32_4 : i32 to vector<1x512xi32>
    %11 = arith.cmpi ne, %9, %10 : vector<1x512xi32>
    %c0_i32_5 = arith.constant 0 : i32
    %12 = vector.broadcast %c0_i32_5 : i32 to vector<1x512xi32>
    %13 = arith.cmpi slt, %9, %12 : vector<1x512xi32>
    %c0_i32_6 = arith.constant 0 : i32
    %14 = arith.cmpi slt, %7, %c0_i32_6 : i32
    %15 = vector.broadcast %14 : i1 to vector<1x512xi1>
    %16 = vector.broadcast %15 : vector<1x512xi1> to vector<1x512xi1>
    %17 = arith.xori %13, %16 : vector<1x512xi1>
    %18 = arith.andi %17, %11 : vector<1x512xi1>
    %19 = vector.broadcast %7 : i32 to vector<1x512xi32>
    %20 = arith.addi %9, %19 : vector<1x512xi32>
    %21 = arith.select %18, %20, %9 : vector<1x512xi1>, vector<1x512xi32>
    %c0_7 = arith.constant 0 : index
    %c0_8 = arith.constant 0 : index
    %22 = vector.load %arg2[%c0_7, %c0_8] : memref<48x48xbf16, #tpu.memory_space<vmem>>, vector<48x48xbf16>
    %c0_9 = arith.constant 0 : index
    %c0_10 = arith.constant 0 : index
    %23 = vector.load %arg3[%c0_9, %c0_10] : memref<16x7xf32, #tpu.memory_space<vmem>>, vector<16x7xf32>
    %24 = vector.extract_strided_slice %23 {offsets = [0, 0], sizes = [16, 1], strides = [1, 1]} : vector<16x7xf32> to vector<16x1xf32>
    %25 = vector.extract_strided_slice %23 {offsets = [0, 1], sizes = [16, 1], strides = [1, 1]} : vector<16x7xf32> to vector<16x1xf32>
    %26 = vector.extract_strided_slice %23 {offsets = [0, 2], sizes = [16, 1], strides = [1, 1]} : vector<16x7xf32> to vector<16x1xf32>
    %27 = vector.extract_strided_slice %23 {offsets = [0, 3], sizes = [16, 2], strides = [1, 1]} : vector<16x7xf32> to vector<16x2xf32>
    %28 = vector.extract_strided_slice %23 {offsets = [0, 5], sizes = [16, 2], strides = [1, 1]} : vector<16x7xf32> to vector<16x2xf32>
    %c16_i32 = arith.constant 16 : i32
    %29 = vector.broadcast %c16_i32 : i32 to vector<1x512xi32>
    %30 = arith.cmpi slt, %21, %29 : vector<1x512xi32>
    %c16_i32_11 = arith.constant 16 : i32
    %31 = tpu.dynamic_rotate %4 by %c16_i32_11 dim 1 : vector<8x512xf32>, i32 -> vector<8x512xf32>
    %cst = arith.constant 0.000000e+00 : f32
    %32 = vector.shape_cast %30 : vector<1x512xi1> to vector<1x512xi1>
    %33 = vector.broadcast %32 : vector<1x512xi1> to vector<8x512xi1>
    %34 = vector.broadcast %cst : f32 to vector<8x512xf32>
    %35 = arith.select %33, %34, %31 : vector<8x512xi1>, vector<8x512xf32>
    %c240_i32 = arith.constant 240 : i32
    %36 = vector.broadcast %c240_i32 : i32 to vector<1x512xi32>
    %37 = arith.cmpi sge, %21, %36 : vector<1x512xi32>
    %c496_i32 = arith.constant 496 : i32
    %38 = tpu.dynamic_rotate %4 by %c496_i32 dim 1 : vector<8x512xf32>, i32 -> vector<8x512xf32>
    %cst_12 = arith.constant 0.000000e+00 : f32
    %39 = vector.shape_cast %37 : vector<1x512xi1> to vector<1x512xi1>
    %40 = vector.broadcast %39 : vector<1x512xi1> to vector<8x512xi1>
    %41 = vector.broadcast %cst_12 : f32 to vector<8x512xf32>
    %42 = arith.select %40, %41, %38 : vector<8x512xi1>, vector<8x512xf32>
    %43 = tpu.concatenate %35, %4, %42 in 0 : vector<8x512xf32>, vector<8x512xf32>, vector<8x512xf32> -> vector<24x512xf32>
    %44 = arith.truncf %43 : vector<24x512xf32> to vector<24x512xbf16>
    %45 = vector.extract_strided_slice %22 {offsets = [0, 0], sizes = [32, 24], strides = [1, 1]} : vector<48x48xbf16> to vector<32x24xbf16>
    %cst_13 = arith.constant dense<0.000000e+00> : vector<32x512xf32>
    %46 = tpu.matmul %45, %44, %cst_13 {dimension_numbers = #tpu.dot_dimension_numbers<[1], [0], [0], [1], [0, 0, 1, 1], [], []>} : vector<32x24xbf16>, vector<24x512xbf16>, vector<32x512xf32> -> vector<32x512xf32>
    %47 = vector.extract_strided_slice %46 {offsets = [0, 0], sizes = [16, 512], strides = [1, 1]} : vector<32x512xf32> to vector<16x512xf32>
    %48 = vector.broadcast %24 : vector<16x1xf32> to vector<16x512xf32>
    %49 = arith.addf %47, %48 : vector<16x512xf32>
    %cst_14 = arith.constant 0.000000e+00 : f32
    %50 = vector.broadcast %cst_14 : f32 to vector<16x512xf32>
    %51 = arith.maximumf %49, %50 : vector<16x512xf32>
    %52 = vector.extract_strided_slice %46 {offsets = [16, 0], sizes = [16, 512], strides = [1, 1]} : vector<32x512xf32> to vector<16x512xf32>
    %53 = vector.broadcast %26 : vector<16x1xf32> to vector<16x512xf32>
    %54 = arith.addf %52, %53 : vector<16x512xf32>
    %c16_i32_15 = arith.constant 16 : i32
    %55 = vector.broadcast %c16_i32_15 : i32 to vector<1x512xi32>
    %56 = arith.cmpi slt, %21, %55 : vector<1x512xi32>
    %c16_i32_16 = arith.constant 16 : i32
    %57 = tpu.dynamic_rotate %51 by %c16_i32_16 dim 1 : vector<16x512xf32>, i32 -> vector<16x512xf32>
    %cst_17 = arith.constant 0.000000e+00 : f32
    %58 = vector.shape_cast %56 : vector<1x512xi1> to vector<1x512xi1>
    %59 = vector.broadcast %58 : vector<1x512xi1> to vector<16x512xi1>
    %60 = vector.broadcast %cst_17 : f32 to vector<16x512xf32>
    %61 = arith.select %59, %60, %57 : vector<16x512xi1>, vector<16x512xf32>
    %c240_i32_18 = arith.constant 240 : i32
    %62 = vector.broadcast %c240_i32_18 : i32 to vector<1x512xi32>
    %63 = arith.cmpi sge, %21, %62 : vector<1x512xi32>
    %c496_i32_19 = arith.constant 496 : i32
    %64 = tpu.dynamic_rotate %51 by %c496_i32_19 dim 1 : vector<16x512xf32>, i32 -> vector<16x512xf32>
    %cst_20 = arith.constant 0.000000e+00 : f32
    %65 = vector.shape_cast %63 : vector<1x512xi1> to vector<1x512xi1>
    %66 = vector.broadcast %65 : vector<1x512xi1> to vector<16x512xi1>
    %67 = vector.broadcast %cst_20 : f32 to vector<16x512xf32>
    %68 = arith.select %66, %67, %64 : vector<16x512xi1>, vector<16x512xf32>
    %69 = tpu.concatenate %61, %51, %68 in 0 : vector<16x512xf32>, vector<16x512xf32>, vector<16x512xf32> -> vector<48x512xf32>
    %70 = arith.truncf %69 : vector<48x512xf32> to vector<48x512xbf16>
    %71 = vector.extract_strided_slice %22 {offsets = [32, 0], sizes = [16, 48], strides = [1, 1]} : vector<48x48xbf16> to vector<16x48xbf16>
    %cst_21 = arith.constant dense<0.000000e+00> : vector<16x512xf32>
    %72 = tpu.matmul %71, %70, %cst_21 {dimension_numbers = #tpu.dot_dimension_numbers<[1], [0], [0], [1], [0, 0, 1, 1], [], []>} : vector<16x48xbf16>, vector<48x512xbf16>, vector<16x512xf32> -> vector<16x512xf32>
    %73 = vector.broadcast %25 : vector<16x1xf32> to vector<16x512xf32>
    %74 = arith.addf %72, %73 : vector<16x512xf32>
    %75 = vector.extract_strided_slice %74 {offsets = [0, 0], sizes = [16, 256], strides = [1, 1]} : vector<16x512xf32> to vector<16x256xf32>
    %cst_22 = arith.constant dense<0.000000e+00> : vector<16xf32>
    %76 = vector.multi_reduction <add>, %75, %cst_22 [1] : vector<16x256xf32> to vector<16xf32>
    %77 = vector.shape_cast %76 : vector<16xf32> to vector<16x1xf32>
    %cst_23 = arith.constant 3.906250e-03 : f32
    %78 = vector.broadcast %cst_23 : f32 to vector<16x1xf32>
    %79 = arith.mulf %77, %78 : vector<16x1xf32>
    %80 = vector.broadcast %79 : vector<16x1xf32> to vector<16x2xf32>
    %81 = arith.mulf %27, %80 : vector<16x2xf32>
    %cst_24 = arith.constant dense<0.000000e+00> : vector<2xf32>
    %82 = vector.multi_reduction <add>, %81, %cst_24 [0] : vector<16x2xf32> to vector<2xf32>
    %83 = vector.shape_cast %82 : vector<2xf32> to vector<1x2xf32>
    %cst_25 = arith.constant 0.000000e+00 : f32
    %84 = vector.broadcast %cst_25 : f32 to vector<1x2xf32>
    %85 = arith.maximumf %83, %84 : vector<1x2xf32>
    %86 = vector.broadcast %85 : vector<1x2xf32> to vector<16x2xf32>
    %87 = arith.mulf %28, %86 : vector<16x2xf32>
    %cst_26 = arith.constant dense<0.000000e+00> : vector<16xf32>
    %88 = vector.multi_reduction <add>, %87, %cst_26 [1] : vector<16x2xf32> to vector<16xf32>
    %89 = vector.shape_cast %88 : vector<16xf32> to vector<16x1xf32>
    %90 = arith.negf %89 : vector<16x1xf32>
    %91 = math.exp %90 : vector<16x1xf32>
    %cst_27 = arith.constant 1.000000e+00 : f32
    %92 = vector.broadcast %cst_27 : f32 to vector<16x1xf32>
    %93 = arith.addf %92, %91 : vector<16x1xf32>
    %94 = arith.divf %92, %93 : vector<16x1xf32>
    %95 = vector.broadcast %94 : vector<16x1xf32> to vector<16x256xf32>
    %96 = arith.mulf %75, %95 : vector<16x256xf32>
    %97 = vector.extract_strided_slice %54 {offsets = [0, 0], sizes = [16, 256], strides = [1, 1]} : vector<16x512xf32> to vector<16x256xf32>
    %98 = arith.addf %96, %97 : vector<16x256xf32>
    %cst_28 = arith.constant 0.000000e+00 : f32
    %99 = vector.broadcast %cst_28 : f32 to vector<16x256xf32>
    %100 = arith.maximumf %98, %99 : vector<16x256xf32>
    %c0_29 = arith.constant 0 : index
    %c0_30 = arith.constant 0 : index
    %c0_31 = arith.constant 0 : index
    %101 = vector.load %arg4[%c0_29, %c0_30, %c0_31] : memref<2x16x256xf32, #tpu.memory_space<vmem>>, vector<1x16x256xf32>
    %102 = vector.shape_cast %101 : vector<1x16x256xf32> to vector<16x256xf32>
    %103 = vector.shape_cast %100 : vector<16x256xf32> to vector<1x16x256xf32>
    tpu.vector_store %arg4[%c0_29, %c0_30, %c0_31], %103 {strides = array<i32>} : memref<2x16x256xf32, #tpu.memory_space<vmem>>, vector<1x16x256xf32>,
    %104 = vector.extract_strided_slice %74 {offsets = [0, 256], sizes = [16, 256], strides = [1, 1]} : vector<16x512xf32> to vector<16x256xf32>
    %cst_32 = arith.constant dense<0.000000e+00> : vector<16xf32>
    %105 = vector.multi_reduction <add>, %104, %cst_32 [1] : vector<16x256xf32> to vector<16xf32>
    %106 = vector.shape_cast %105 : vector<16xf32> to vector<16x1xf32>
    %cst_33 = arith.constant 3.906250e-03 : f32
    %107 = vector.broadcast %cst_33 : f32 to vector<16x1xf32>
    %108 = arith.mulf %106, %107 : vector<16x1xf32>
    %109 = vector.broadcast %108 : vector<16x1xf32> to vector<16x2xf32>
    %110 = arith.mulf %27, %109 : vector<16x2xf32>
    %cst_34 = arith.constant dense<0.000000e+00> : vector<2xf32>
    %111 = vector.multi_reduction <add>, %110, %cst_34 [0] : vector<16x2xf32> to vector<2xf32>
    %112 = vector.shape_cast %111 : vector<2xf32> to vector<1x2xf32>
    %cst_35 = arith.constant 0.000000e+00 : f32
    %113 = vector.broadcast %cst_35 : f32 to vector<1x2xf32>
    %114 = arith.maximumf %112, %113 : vector<1x2xf32>
    %115 = vector.broadcast %114 : vector<1x2xf32> to vector<16x2xf32>
    %116 = arith.mulf %28, %115 : vector<16x2xf32>
    %cst_36 = arith.constant dense<0.000000e+00> : vector<16xf32>
    %117 = vector.multi_reduction <add>, %116, %cst_36 [1] : vector<16x2xf32> to vector<16xf32>
    %118 = vector.shape_cast %117 : vector<16xf32> to vector<16x1xf32>
    %119 = arith.negf %118 : vector<16x1xf32>
    %120 = math.exp %119 : vector<16x1xf32>
    %cst_37 = arith.constant 1.000000e+00 : f32
    %121 = vector.broadcast %cst_37 : f32 to vector<16x1xf32>
    %122 = arith.addf %121, %120 : vector<16x1xf32>
    %123 = arith.divf %121, %122 : vector<16x1xf32>
    %124 = vector.broadcast %123 : vector<16x1xf32> to vector<16x256xf32>
    %125 = arith.mulf %104, %124 : vector<16x256xf32>
    %126 = vector.extract_strided_slice %54 {offsets = [0, 256], sizes = [16, 256], strides = [1, 1]} : vector<16x512xf32> to vector<16x256xf32>
    %127 = arith.addf %125, %126 : vector<16x256xf32>
    %cst_38 = arith.constant 0.000000e+00 : f32
    %128 = vector.broadcast %cst_38 : f32 to vector<16x256xf32>
    %129 = arith.maximumf %127, %128 : vector<16x256xf32>
    %c1_39 = arith.constant 1 : index
    %c0_40 = arith.constant 0 : index
    %c0_41 = arith.constant 0 : index
    %130 = vector.load %arg4[%c1_39, %c0_40, %c0_41] : memref<2x16x256xf32, #tpu.memory_space<vmem>>, vector<1x16x256xf32>
    %131 = vector.shape_cast %130 : vector<1x16x256xf32> to vector<16x256xf32>
    %132 = vector.shape_cast %129 : vector<16x256xf32> to vector<1x16x256xf32>
    tpu.vector_store %arg4[%c1_39, %c0_40, %c0_41], %132 {strides = array<i32>} : memref<2x16x256xf32, #tpu.memory_space<vmem>>, vector<1x16x256xf32>,
    return
  }
  func.func @transform_0(%arg0: i32) -> (i32, i32, i32) {
    %c0_i32 = arith.constant 0 : i32
    %c0_i32_0 = arith.constant 0 : i32
    %c0_i32_1 = arith.constant 0 : i32
    %c0_i32_2 = arith.constant 0 : i32
    return %c0_i32, %c0_i32_0, %c0_i32_1 : i32, i32, i32
  }
  func.func @transform_1(%arg0: i32) -> (i32, i32) {
    %c0_i32 = arith.constant 0 : i32
    %c0_i32_0 = arith.constant 0 : i32
    %c0_i32_1 = arith.constant 0 : i32
    return %c0_i32, %c0_i32_0 : i32, i32
  }
  func.func @transform_2(%arg0: i32) -> (i32, i32) {
    %c0_i32 = arith.constant 0 : i32
    %c0_i32_0 = arith.constant 0 : i32
    %c0_i32_1 = arith.constant 0 : i32
    return %c0_i32, %c0_i32_0 : i32, i32
  }
  func.func @transform_3(%arg0: i32) -> (i32, i32, i32) {
    %c0_i32 = arith.constant 0 : i32
    %c0_i32_0 = arith.constant 0 : i32
    %c0_i32_1 = arith.constant 0 : i32
    %c0_i32_2 = arith.constant 0 : i32
    return %c0_i32, %c0_i32_0, %c0_i32_1 : i32, i32, i32
  }
}

</mosaic_0001>

<llo_original>
// kernel: tpu_custom_call.1
$region0: #{tpu_custom_call.1}
  #allocation0 [shape = 'u32[]', space=smem, size = 0x4, offset = 0x4, fixed_abs, tag = 'smem constant byte address 0x4 - core index']
  #allocation1 [shape = 'u32[72,128]{1,0:T(1,128)}', space=vmem, size = 0x9000, scoped, tag = 'internal scratch']
  %s0 = inlined_call_operand.hbm [shape: f32[2,8,256], index: 0, kind: input, shape index: {}]
  %s1 = inlined_call_operand.vmem [shape: bf16[48,48], index: 1, kind: input, shape index: {}]
  %s2 = inlined_call_operand.vmem [shape: f32[16,7], index: 2, kind: input, shape index: {}]
  %s3 = inlined_call_operand.hbm [shape: f32[2,16,256], index: 3, kind: output, shape index: {}]
  %s4 = sld [smem:[#allocation0]]
  $region26: #{tpu_custom_call.1} parent=0
    _
  %s6 = ssub.s32 1, %s4
  %s7 = scalar_select 0, %s6, %s4
  $region1: #{tpu_custom_call.1} parent=0
    #allocation2 [shape = 'u8[16384]{0}', space=vmem, size = 0x4000, scoped, tag = 'input window, operand 0, single buffered']
    #allocation3 [shape = 's32[1]{0}', space=sflag, size = 0x4, scoped, tag = 'scoped memory for tpu_custom_call.1']
    #allocation4 [shape = 's32[1]{0}', space=sflag, size = 0x4, scoped, tag = 'scoped memory for tpu_custom_call.1']
    #allocation5 [shape = 'u8[32768]{0}', space=vmem, size = 0x8000, scoped, tag = 'output window, operand 0, single buffered']
    %8 = vsyncpa [#allocation3], 0
    %9 = vsyncpa [#allocation4], 0
    // Predicated region
    $region2: #{tpu_custom_call.1} parent=1 // pred_check
      _
    $region3: #{tpu_custom_call.1} parent=1 // pred_check_branch
      %11 = sbr.rel (0) target = $region5
    $region4: #{tpu_custom_call.1} parent=1 // pred_region
      %13 = vsyncadd [#allocation3], 0
      %s14 = sshll.u32 %s0, 4
      %s15 = int_to_ptr.hbm [resolvable:$true] %s14
      %s16 = sshll.u32 [#allocation2], 4
      %s17 = int_to_ptr.vmem [resolvable:$true] %s16
      %22 = dma.hbm_to_vmem [thread:$0]  %s15, 512, %s17, [#allocation3], 256, 256, 16
    $region5: #{tpu_custom_call.1} parent=1 // pred_fallthru
      _
    // Predicated region
    $region6: #{tpu_custom_call.1} parent=1 // pred_check
      _
    $region7: #{tpu_custom_call.1} parent=1 // pred_check_branch
      %24 = sbr.rel (0) target = $region9
    $region8: #{tpu_custom_call.1} parent=1 // pred_region
      _
    $region9: #{tpu_custom_call.1} parent=1 // pred_fallthru
      _
    // Predicated region
    $region10: #{tpu_custom_call.1} parent=1 // pred_check
      _
    $region11: #{tpu_custom_call.1} parent=1 // pred_check_branch
      %26 = sbr.rel (0) target = $region13
    $region12: #{tpu_custom_call.1} parent=1 // pred_region
      _
    $region13: #{tpu_custom_call.1} parent=1 // pred_fallthru
      _
    // Predicated region
    $region14: #{tpu_custom_call.1} parent=1 // pred_check
      _
    $region15: #{tpu_custom_call.1} parent=1 // pred_check_branch
      %28 = sbr.rel (0) target = $region17
    $region16: #{tpu_custom_call.1} parent=1 // pred_region
      %30 = dma.done [#allocation3], 512
    $region17: #{tpu_custom_call.1} parent=1 // pred_fallthru
      _
    %v32 = vld [vmem:[#allocation2] sm:$0xff]
    %v33 = vld [vmem:[#allocation2 + $0x8] sm:$0xff]
    %s34 = scalar_lea.vmem [#allocation2], 16
    %v35 = vld [vmem:[%s34] sm:$0xff]
    %v36 = vld [vmem:[%s34 + $0x8] sm:$0xff]
    %v37 = vlaneseq
    %v38 = vand.u32 %v37, 127
    %v39 = vadd.s32 %v38, 128
    %v40 = vadd.s32 %v38, 256
    %v41 = vadd.s32 %v38, 384
    %vm42 = vcmp.lt.s32.totalorder %v38, 0
    %v43 = vsub.s32 0, %v38
    %v44 = vsel %vm42, %v43, %v38
    %v45 = vshrl.u32 %v44, 8
    %v46 = vand.u32 %v44, 255
    %v47 = vsub.s32 0, %v46
    %v48 = vsel %vm42, %v47, %v46
    %vm49 = vcmp.lt.s32.totalorder %v39, 0
    %v50 = vsub.s32 0, %v39
    %v51 = vsel %vm49, %v50, %v39
    %v52 = vshrl.u32 %v51, 8
    %v53 = vand.u32 %v51, 255
    %v54 = vsub.s32 0, %v53
    %v55 = vsel %vm49, %v54, %v53
    %vm56 = vcmp.lt.s32.totalorder %v40, 0
    %v57 = vsub.s32 0, %v40
    %v58 = vsel %vm56, %v57, %v40
    %v59 = vshrl.u32 %v58, 8
    %v60 = vand.u32 %v58, 255
    %v61 = vsub.s32 0, %v60
    %v62 = vsel %vm56, %v61, %v60
    %vm63 = vcmp.lt.s32.totalorder %v41, 0
    %v64 = vsub.s32 0, %v41
    %v65 = vsel %vm63, %v64, %v41
    %v66 = vshrl.u32 %v65, 8
    %v67 = vand.u32 %v65, 255
    %v68 = vsub.s32 0, %v67
    %v69 = vsel %vm63, %v68, %v67
    %vm70 = vcmp.ne.s32.totalorder %v48, 0
    %vm71 = vcmp.ne.s32.totalorder %v55, 0
    %vm72 = vcmp.ne.s32.totalorder %v62, 0
    %vm73 = vcmp.ne.s32.totalorder %v69, 0
    %vm74 = vcmp.lt.s32.totalorder %v48, 0
    %vm75 = vcmp.lt.s32.totalorder %v55, 0
    %vm76 = vcmp.lt.s32.totalorder %v62, 0
    %vm77 = vcmp.lt.s32.totalorder %v69, 0
    %vm78 = vmand %vm74, %vm70
    %vm79 = vmand %vm75, %vm71
    %vm80 = vmand %vm76, %vm72
    %vm81 = vmand %vm77, %vm73
    %v82 = vadd.s32 %v48, 256
    %v83 = vadd.s32 %v55, 256
    %v84 = vadd.s32 %v62, 256
    %v85 = vadd.s32 %v69, 256
    %v86 = vsel %vm78, %v82, %v48
    %v87 = vsel %vm79, %v83, %v55
    %v88 = vsel %vm80, %v84, %v62
    %v89 = vsel %vm81, %v85, %v69
    %v90 = vld [vmem:[%s1] sm:$0xf]
    %v91 = vld [vmem:[%s1 + $0x4] sm:$0xf]
    %v92 = vld [vmem:[%s1 + $0x8] sm:$0xf]
    %v93 = vld [vmem:[%s1 + $0xc] sm:$0xf]
    %v94 = vld [vmem:[%s1 + $0x10] sm:$0xf]
    %v95 = vld [vmem:[%s1 + $0x14] sm:$0xf]
    %v96 = vld [vmem:[%s2] sm:$0xff]
    %v97 = vld [vmem:[%s2 + $0x8] sm:$0xff]
    %vm98 = vcmp.lt.s32.totalorder %v86, 16
    %vm99 = vcmp.lt.s32.totalorder %v87, 16
    %vm100 = vcmp.lt.s32.totalorder %v88, 16
    %vm101 = vcmp.lt.s32.totalorder %v89, 16
    %102 = vrot.lane.b32.xlu0 %v32, 16
    %v103 = vpop.permute.xlu0 %102
    %104 = vrot.lane.b32.xlu0 %v33, 16
    %v105 = vpop.permute.xlu0 %104
    %106 = vrot.lane.b32.xlu0 %v35, 16
    %v107 = vpop.permute.xlu0 %106
    %108 = vrot.lane.b32.xlu0 %v36, 16
    %v109 = vpop.permute.xlu0 %108
    %vm110 = vcmp.lt.s32.totalorder %v38, 16
    %v111 = vsel %vm110, %v107, %v109
    %v112 = vsel %vm110, %v105, %v107
    %v113 = vsel %vm110, %v103, %v105
    %v114 = vsel %vm110, %v109, %v103
    %v115 = vsel %vm98, 1, 0
    %v116 = vsel %vm99, 1, 0
    %v117 = vsel %vm100, 1, 0
    %v118 = vsel %vm101, 1, 0
    %vm119 = vcmp.eq.s32.totalorder %v115, 1
    %vm120 = vcmp.eq.s32.totalorder %v116, 1
    %vm121 = vcmp.eq.s32.totalorder %v117, 1
    %vm122 = vcmp.eq.s32.totalorder %v118, 1
    %v123 = vsel %vm119, 0.0, %v114
    %v124 = vsel %vm120, 0.0, %v113
    %v125 = vsel %vm121, 0.0, %v112
    %v126 = vsel %vm122, 0.0, %v111
    %vm127 = vcmp.ge.s32.totalorder %v86, 240
    %vm128 = vcmp.ge.s32.totalorder %v87, 240
    %vm129 = vcmp.ge.s32.totalorder %v88, 240
    %vm130 = vcmp.ge.s32.totalorder %v89, 240
    %131 = vrot.lane.b32.xlu0 %v32, 112
    %v132 = vpop.permute.xlu0 %131
    %133 = vrot.lane.b32.xlu0 %v33, 112
    %v134 = vpop.permute.xlu0 %133
    %135 = vrot.lane.b32.xlu0 %v35, 112
    %v136 = vpop.permute.xlu0 %135
    %137 = vrot.lane.b32.xlu0 %v36, 112
    %v138 = vpop.permute.xlu0 %137
    %vm139 = vcmp.lt.s32.totalorder %v38, 112
    %v140 = vsel %vm139, %v136, %v138
    %v141 = vsel %vm139, %v134, %v136
    %v142 = vsel %vm139, %v132, %v134
    %v143 = vsel %vm139, %v138, %v132
    %v144 = vsel %vm127, 1, 0
    %v145 = vsel %vm128, 1, 0
    %v146 = vsel %vm129, 1, 0
    %v147 = vsel %vm130, 1, 0
    %vm148 = vcmp.eq.s32.totalorder %v144, 1
    %vm149 = vcmp.eq.s32.totalorder %v145, 1
    %vm150 = vcmp.eq.s32.totalorder %v146, 1
    %vm151 = vcmp.eq.s32.totalorder %v147, 1
    %v152 = vsel %vm148, 0.0, %v142
    %v153 = vsel %vm149, 0.0, %v141
    %v154 = vsel %vm150, 0.0, %v140
    %v155 = vsel %vm151, 0.0, %v143
    %v156 = vpack.c.bf16 %v32, %v123
    %v157 = vpack.c.bf16 %v33, %v124
    %v158 = vpack.c.bf16 %v35, %v125
    %v159 = vpack.c.bf16 %v36, %v126
    %v160 = vpack.c.bf16 %v152, %v152
    %v161 = vpack.c.bf16 %v153, %v153
    %v162 = vpack.c.bf16 %v154, %v154
    %v163 = vpack.c.bf16 %v155, %v155
    %v168 = vunpack.c.l.b16 %v90
    %v169 = vunpack.c.l.b16 %v91
    %v170 = vunpack.c.l.b16 %v92
    %v171 = vunpack.c.l.b16 %v93
    %v172 = vpack.c.b16 %v169, %v168
    %v173 = vpack.c.b16 %v171, %v170
    %vm174 = vcmask 195584
    %v176 = vsel %vm174, %v172, 0
    %v179 = vsel %vm174, %v173, 0
    %vm181 = vcmask 1043456
    %v183 = vsel %vm181, %v160, 0
    %v186 = vsel %vm181, %v161, 0
    %v189 = vsel %vm181, %v162, 0
    %v192 = vsel %vm181, %v163, 0
    %194 = vmatpush.bf16.msra.mxu0 0
    %195 = vmatpush.bf16.msra.mxu0 0
    %196 = vmatpush.bf16.msra.mxu0 0
    %197 = vmatpush.bf16.msra.mxu0 0
    %198 = vmatpush.bf16.msra.mxu0 0
    %199 = vmatpush.bf16.msra.mxu0 0
    %200 = vmatpush.bf16.msra.mxu0 %v183
    %201 = vmatpush.bf16.msra.mxu0 %v156
    %202 = vmatmul.bf16.gmra.mxu0 %v176
    %v203 = vpop.f32.mrf.mxu0
    %v204 = vadd.f32 0.0, %v203
    %v205 = vpop.f32.mrf.mxu0
    %v206 = vadd.f32 0.0, %v205
    %207 = vmatmul.bf16.gmra.mxu0 %v179
    %v208 = vpop.f32.mrf.mxu0
    %v209 = vadd.f32 0.0, %v208
    %v210 = vpop.f32.mrf.mxu0
    %v211 = vadd.f32 0.0, %v210
    %212 = vdwg.mxu0
    %213 = vmatpush.bf16.msra.mxu0 0
    %214 = vmatpush.bf16.msra.mxu0 0
    %215 = vmatpush.bf16.msra.mxu0 0
    %216 = vmatpush.bf16.msra.mxu0 0
    %217 = vmatpush.bf16.msra.mxu0 0
    %218 = vmatpush.bf16.msra.mxu0 0
    %219 = vmatpush.bf16.msra.mxu0 %v186
    %220 = vmatpush.bf16.msra.mxu0 %v157
    %221 = vmatmul.bf16.gmra.mxu0 %v176
    %v222 = vpop.f32.mrf.mxu0
    %v223 = vadd.f32 0.0, %v222
    %v224 = vpop.f32.mrf.mxu0
    %v225 = vadd.f32 0.0, %v224
    %226 = vmatmul.bf16.gmra.mxu0 %v179
    %v227 = vpop.f32.mrf.mxu0
    %v228 = vadd.f32 0.0, %v227
    %v229 = vpop.f32.mrf.mxu0
    %v230 = vadd.f32 0.0, %v229
    %231 = vdwg.mxu0
    %232 = vmatpush.bf16.msra.mxu0 0
    %233 = vmatpush.bf16.msra.mxu0 0
    %234 = vmatpush.bf16.msra.mxu0 0
    %235 = vmatpush.bf16.msra.mxu0 0
    %236 = vmatpush.bf16.msra.mxu0 0
    %237 = vmatpush.bf16.msra.mxu0 0
    %238 = vmatpush.bf16.msra.mxu0 %v189
    %239 = vmatpush.bf16.msra.mxu0 %v158
    %240 = vmatmul.bf16.gmra.mxu0 %v176
    %v241 = vpop.f32.mrf.mxu0
    %v242 = vadd.f32 0.0, %v241
    %v243 = vpop.f32.mrf.mxu0
    %v244 = vadd.f32 0.0, %v243
    %245 = vmatmul.bf16.gmra.mxu0 %v179
    %v246 = vpop.f32.mrf.mxu0
    %v247 = vadd.f32 0.0, %v246
    %v248 = vpop.f32.mrf.mxu0
    %v249 = vadd.f32 0.0, %v248
    %250 = vdwg.mxu0
    %251 = vmatpush.bf16.msra.mxu0 0
    %252 = vmatpush.bf16.msra.mxu0 0
    %253 = vmatpush.bf16.msra.mxu0 0
    %254 = vmatpush.bf16.msra.mxu0 0
    %255 = vmatpush.bf16.msra.mxu0 0
    %256 = vmatpush.bf16.msra.mxu0 0
    %257 = vmatpush.bf16.msra.mxu0 %v192
    %258 = vmatpush.bf16.msra.mxu0 %v159
    %259 = vmatmul.bf16.gmra.mxu0 %v176
    %v260 = vpop.f32.mrf.mxu0
    %v261 = vadd.f32 0.0, %v260
    %v262 = vpop.f32.mrf.mxu0
    %v263 = vadd.f32 0.0, %v262
    %264 = vmatmul.bf16.gmra.mxu0 %v179
    %v265 = vpop.f32.mrf.mxu0
    %v266 = vadd.f32 0.0, %v265
    %v267 = vpop.f32.mrf.mxu0
    %v268 = vadd.f32 0.0, %v267
    %269 = vdwg.mxu0
    %271 = vset.pattern.permute.xlu0 0
    %272 = vperm.xlu0 %271, %v96
    %v273 = vpop.permute.xlu0 %272
    %276 = vset.pattern.permute.xlu0 0
    %277 = vperm.xlu0 %276, %v97
    %v278 = vpop.permute.xlu0 %277
    %v280 = vadd.f32 %v204, %v273
    %v281 = vadd.f32 %v223, %v273
    %v282 = vadd.f32 %v242, %v273
    %v283 = vadd.f32 %v261, %v273
    %v284 = vadd.f32 %v206, %v278
    %v285 = vadd.f32 %v225, %v278
    %v286 = vadd.f32 %v244, %v278
    %v287 = vadd.f32 %v263, %v278
    %v288 = vmax.f32 %v280, 0.0
    %v289 = vmax.f32 %v281, 0.0
    %v290 = vmax.f32 %v282, 0.0
    %v291 = vmax.f32 %v283, 0.0
    %v292 = vmax.f32 %v284, 0.0
    %v293 = vmax.f32 %v285, 0.0
    %v294 = vmax.f32 %v286, 0.0
    %v295 = vmax.f32 %v287, 0.0
    %296 = vset.pattern.permute.xlu0 2
    %297 = vperm.xlu0 %296, %v96
    %v298 = vpop.permute.xlu0 %297
    %300 = vset.pattern.permute.xlu0 2
    %301 = vperm.xlu0 %300, %v97
    %v302 = vpop.permute.xlu0 %301
    %v304 = vadd.f32 %v209, %v298
    %v305 = vadd.f32 %v228, %v298
    %v306 = vadd.f32 %v247, %v298
    %v307 = vadd.f32 %v266, %v298
    %v308 = vadd.f32 %v211, %v302
    %v309 = vadd.f32 %v230, %v302
    %v310 = vadd.f32 %v249, %v302
    %v311 = vadd.f32 %v268, %v302
    %312 = vrot.lane.b32.xlu0 %v288, 16
    %v313 = vpop.permute.xlu0 %312
    %314 = vrot.lane.b32.xlu0 %v292, 16
    %v315 = vpop.permute.xlu0 %314
    %316 = vrot.lane.b32.xlu0 %v289, 16
    %v317 = vpop.permute.xlu0 %316
    %318 = vrot.lane.b32.xlu0 %v293, 16
    %v319 = vpop.permute.xlu0 %318
    %320 = vrot.lane.b32.xlu0 %v290, 16
    %v321 = vpop.permute.xlu0 %320
    %322 = vrot.lane.b32.xlu0 %v294, 16
    %v323 = vpop.permute.xlu0 %322
    %324 = vrot.lane.b32.xlu0 %v291, 16
    %v325 = vpop.permute.xlu0 %324
    %326 = vrot.lane.b32.xlu0 %v295, 16
    %v327 = vpop.permute.xlu0 %326
    %v328 = vsel %vm110, %v321, %v325
    %v329 = vsel %vm110, %v323, %v327
    %v330 = vsel %vm110, %v317, %v321
    %v331 = vsel %vm110, %v319, %v323
    %v332 = vsel %vm110, %v313, %v317
    %v333 = vsel %vm110, %v315, %v319
    %v334 = vsel %vm110, %v325, %v313
    %v335 = vsel %vm110, %v327, %v315
    %v336 = vsel %vm119, 0.0, %v334
    %v337 = vsel %vm120, 0.0, %v332
    %v338 = vsel %vm121, 0.0, %v330
    %v339 = vsel %vm122, 0.0, %v328
    %v340 = vsel %vm119, 0.0, %v335
    %v341 = vsel %vm120, 0.0, %v333
    %v342 = vsel %vm121, 0.0, %v331
    %v343 = vsel %vm122, 0.0, %v329
    %344 = vrot.lane.b32.xlu0 %v288, 112
    %v345 = vpop.permute.xlu0 %344
    %346 = vrot.lane.b32.xlu0 %v292, 112
    %v347 = vpop.permute.xlu0 %346
    %348 = vrot.lane.b32.xlu0 %v289, 112
    %v349 = vpop.permute.xlu0 %348
    %350 = vrot.lane.b32.xlu0 %v293, 112
    %v351 = vpop.permute.xlu0 %350
    %352 = vrot.lane.b32.xlu0 %v290, 112
    %v353 = vpop.permute.xlu0 %352
    %354 = vrot.lane.b32.xlu0 %v294, 112
    %v355 = vpop.permute.xlu0 %354
    %356 = vrot.lane.b32.xlu0 %v291, 112
    %v357 = vpop.permute.xlu0 %356
    %358 = vrot.lane.b32.xlu0 %v295, 112
    %v359 = vpop.permute.xlu0 %358
    %v360 = vsel %vm139, %v353, %v357
    %v361 = vsel %vm139, %v355, %v359
    %v362 = vsel %vm139, %v349, %v353
    %v363 = vsel %vm139, %v351, %v355
    %v364 = vsel %vm139, %v345, %v349
    %v365 = vsel %vm139, %v347, %v351
    %v366 = vsel %vm139, %v357, %v345
    %v367 = vsel %vm139, %v359, %v347
    %v368 = vsel %vm148, 0.0, %v364
    %v369 = vsel %vm149, 0.0, %v362
    %v370 = vsel %vm150, 0.0, %v360
    %v371 = vsel %vm151, 0.0, %v366
    %v372 = vsel %vm148, 0.0, %v365
    %v373 = vsel %vm149, 0.0, %v363
    %v374 = vsel %vm150, 0.0, %v361
    %v375 = vsel %vm151, 0.0, %v367
    %v376 = vpack.c.bf16 %v340, %v336
    %v377 = vpack.c.bf16 %v341, %v337
    %v378 = vpack.c.bf16 %v342, %v338
    %v379 = vpack.c.bf16 %v343, %v339
    %v380 = vpack.c.bf16 %v292, %v288
    %v381 = vpack.c.bf16 %v293, %v289
    %v382 = vpack.c.bf16 %v294, %v290
    %v383 = vpack.c.bf16 %v295, %v291
    %v384 = vpack.c.bf16 %v372, %v368
    %v385 = vpack.c.bf16 %v373, %v369
    %v386 = vpack.c.bf16 %v374, %v370
    %v387 = vpack.c.bf16 %v375, %v371
    %388 = vset.pattern.permute.xlu0 1
    %389 = vperm.xlu0 %388, %v96
    %v390 = vpop.permute.xlu0 %389
    %392 = vset.pattern.permute.xlu0 1
    %393 = vperm.xlu0 %392, %v97
    %v394 = vpop.permute.xlu0 %393
    %v398 = vunpack.c.l.b16 %v94
    %v399 = vunpack.c.l.b16 %v95
    %v400 = vpack.c.b16 %v399, %v398
    %vm401 = vcmask 392192
    %v403 = vsel %vm401, %v400, 0
    %405 = vmatpush.bf16.msra.mxu0 0
    %406 = vmatpush.bf16.msra.mxu0 0
    %407 = vmatpush.bf16.msra.mxu0 0
    %408 = vmatpush.bf16.msra.mxu0 0
    %409 = vmatpush.bf16.msra.mxu0 0
    %410 = vmatpush.bf16.msra.mxu0 %v384
    %411 = vmatpush.bf16.msra.mxu0 %v380
    %412 = vmatpush.bf16.msra.mxu0 %v376
    %413 = vmatmul.bf16.gmra.mxu0 %v403
    %v414 = vpop.f32.mrf.mxu0
    %v415 = vadd.f32 %v390, %v414
    %v416 = vpop.f32.mrf.mxu0
    %v417 = vadd.f32 %v394, %v416
    %418 = vdwg.mxu0
    %419 = vmatpush.bf16.msra.mxu0 0
    %420 = vmatpush.bf16.msra.mxu0 0
    %421 = vmatpush.bf16.msra.mxu0 0
    %422 = vmatpush.bf16.msra.mxu0 0
    %423 = vmatpush.bf16.msra.mxu0 0
    %424 = vmatpush.bf16.msra.mxu0 %v385
    %425 = vmatpush.bf16.msra.mxu0 %v381
    %426 = vmatpush.bf16.msra.mxu0 %v377
    %427 = vmatmul.bf16.gmra.mxu0 %v403
    %v428 = vpop.f32.mrf.mxu0
    %v429 = vadd.f32 %v390, %v428
    %v430 = vpop.f32.mrf.mxu0
    %v431 = vadd.f32 %v394, %v430
    %432 = vdwg.mxu0
    %433 = vmatpush.bf16.msra.mxu0 0
    %434 = vmatpush.bf16.msra.mxu0 0
    %435 = vmatpush.bf16.msra.mxu0 0
    %436 = vmatpush.bf16.msra.mxu0 0
    %437 = vmatpush.bf16.msra.mxu0 0
    %438 = vmatpush.bf16.msra.mxu0 %v386
    %439 = vmatpush.bf16.msra.mxu0 %v382
    %440 = vmatpush.bf16.msra.mxu0 %v378
    %441 = vmatmul.bf16.gmra.mxu0 %v403
    %v442 = vpop.f32.mrf.mxu0
    %v443 = vadd.f32 %v390, %v442
    %v444 = vpop.f32.mrf.mxu0
    %v445 = vadd.f32 %v394, %v444
    %446 = vdwg.mxu0
    %447 = vmatpush.bf16.msra.mxu0 0
    %448 = vmatpush.bf16.msra.mxu0 0
    %449 = vmatpush.bf16.msra.mxu0 0
    %450 = vmatpush.bf16.msra.mxu0 0
    %451 = vmatpush.bf16.msra.mxu0 0
    %452 = vmatpush.bf16.msra.mxu0 %v387
    %453 = vmatpush.bf16.msra.mxu0 %v383
    %454 = vmatpush.bf16.msra.mxu0 %v379
    %455 = vmatmul.bf16.gmra.mxu0 %v403
    %v456 = vpop.f32.mrf.mxu0
    %v457 = vadd.f32 %v390, %v456
    %v458 = vpop.f32.mrf.mxu0
    %v459 = vadd.f32 %v394, %v458
    %460 = vdwg.mxu0
    %v461 = vadd.f32 %v415, %v429
    %462 = vadd.xlane.f32.xlu0 %v461
    %v463 = vpop.xlane.xlu0 %462
    %v464 = vadd.f32 %v417, %v431
    %465 = vadd.xlane.f32.xlu0 %v464
    %v466 = vpop.xlane.xlu0 %465
    %v467 = vmul.f32 %v463, 0.00390625
    %v468 = vmul.f32 %v466, 0.00390625
    %v469 = vmul.f32 %v96, %v467
    %v470 = vmul.f32 %v97, %v468
    %vm471 = vcmask 39960
    %v472 = vsel %vm471, %v469, 0.0
    %v473 = vsel %vm471, %v470, 0.0
    %v474 = vadd.f32 %v472, %v473
    %v475 = vrot.slane %v474, 4
    %v476 = vadd.f32 %v474, %v475
    %v477 = vrot.slane %v476, 2
    %v478 = vadd.f32 %v476, %v477
    %v479 = vrot.slane %v478, 1
    %v480 = vadd.f32 %v478, %v479
    %v481 = vmax.f32 %v480, 0.0
    %483 = vrot.lane.b32.xlu0 %v481, 2
    %v484 = vpop.permute.xlu0 %483
    %v486 = vmul.f32 %v96, %v484
    %v487 = vmul.f32 %v97, %v484
    %490 = vrot.lane.b32.xlu0 %v486, 123
    %v491 = vpop.permute.xlu0 %490
    %492 = vrot.lane.b32.xlu0 %v487, 123
    %v493 = vpop.permute.xlu0 %492
    %vm496 = vcmask 15360
    %v497 = vsel %vm496, %v491, 0.0
    %498 = vadd.xlane.f32.xlu0 %v497
    %v499 = vpop.xlane.xlu0 %498
    %v500 = vsel %vm496, %v493, 0.0
    %501 = vadd.xlane.f32.xlu0 %v500
    %v502 = vpop.xlane.xlu0 %501
    %v503 = vxor.u32 %v499, 2147483648
    %v504 = vxor.u32 %v502, 2147483648
    %v505 = vmul.f32 %v503, 1.442695
    %v506 = vpow.pop %v505
    %v507 = vmul.f32 %v504, 1.442695
    %v508 = vpow.pop %v507
    %v509 = vadd.f32 %v506, 1.0
    %v510 = vadd.f32 %v508, 1.0
    %v511 = vrcp.pop %v509
    %v512 = vmul.f32 %v509, %v511
    %v513 = vsub.f32 1.0, %v512
    %v514 = vmul.f32 %v511, %v513
    %v515 = vadd.f32 %v511, %v514
    %vm516 = vweird.f32 %v509
    %vm517 = vweird.f32 %v511
    %vm518 = vmor %vm516, %vm517
    %v519 = vsel %vm518, %v511, %v515
    %v520 = vand.u32 2147483647, %v509
    %vm521 = vcmp.eq.f32.partialorder %v520, 8.507059e+37
    %v522 = vand.u32 %v509, 2147483648
    %v523 = vor.u32 1.1754944e-38, %v522
    %v524 = vsel %vm521, %v523, %v519
    %v525 = vmul.f32 1.0, %v524
    %v526 = vrcp.pop %v510
    %v527 = vmul.f32 %v510, %v526
    %v528 = vsub.f32 1.0, %v527
    %v529 = vmul.f32 %v526, %v528
    %v530 = vadd.f32 %v526, %v529
    %vm531 = vweird.f32 %v510
    %vm532 = vweird.f32 %v526
    %vm533 = vmor %vm531, %vm532
    %v534 = vsel %vm533, %v526, %v530
    %v535 = vand.u32 2147483647, %v510
    %vm536 = vcmp.eq.f32.partialorder %v535, 8.507059e+37
    %v537 = vand.u32 %v510, 2147483648
    %v538 = vor.u32 1.1754944e-38, %v537
    %v539 = vsel %vm536, %v538, %v534
    %v540 = vmul.f32 1.0, %v539
    %v541 = vmul.f32 %v415, %v525
    %v542 = vmul.f32 %v429, %v525
    %v543 = vmul.f32 %v417, %v540
    %v544 = vmul.f32 %v431, %v540
    %v545 = vadd.f32 %v541, %v304
    %v546 = vadd.f32 %v542, %v305
    %v547 = vadd.f32 %v543, %v308
    %v548 = vadd.f32 %v544, %v309
    %v549 = vmax.f32 %v545, 0.0
    %v550 = vmax.f32 %v546, 0.0
    %v551 = vmax.f32 %v547, 0.0
    %v552 = vmax.f32 %v548, 0.0
    %553 = vst [vmem:[#allocation5] sm:$0xff] %v549
    %554 = vst [vmem:[#allocation5 + $0x8] sm:$0xff] %v550
    %555 = vst [vmem:[#allocation5 + $0x10] sm:$0xff] %v551
    %556 = vst [vmem:[#allocation5 + $0x18] sm:$0xff] %v552
    %v557 = vadd.f32 %v443, %v457
    %558 = vadd.xlane.f32.xlu0 %v557
    %v559 = vpop.xlane.xlu0 %558
    %v560 = vadd.f32 %v445, %v459
    %561 = vadd.xlane.f32.xlu0 %v560
    %v562 = vpop.xlane.xlu0 %561
    %v563 = vmul.f32 %v559, 0.00390625
    %v564 = vmul.f32 %v562, 0.00390625
    %v565 = vmul.f32 %v96, %v563
    %v566 = vmul.f32 %v97, %v564
    %v567 = vsel %vm471, %v565, 0.0
    %v568 = vsel %vm471, %v566, 0.0
    %v569 = vadd.f32 %v567, %v568
    %v570 = vrot.slane %v569, 4
    %v571 = vadd.f32 %v569, %v570
    %v572 = vrot.slane %v571, 2
    %v573 = vadd.f32 %v571, %v572
    %v574 = vrot.slane %v573, 1
    %v575 = vadd.f32 %v573, %v574
    %v576 = vmax.f32 %v575, 0.0
    %578 = vrot.lane.b32.xlu0 %v576, 2
    %v579 = vpop.permute.xlu0 %578
    %v581 = vmul.f32 %v96, %v579
    %v582 = vmul.f32 %v97, %v579
    %585 = vrot.lane.b32.xlu0 %v581, 123
    %v586 = vpop.permute.xlu0 %585
    %587 = vrot.lane.b32.xlu0 %v582, 123
    %v588 = vpop.permute.xlu0 %587
    %v591 = vsel %vm496, %v586, 0.0
    %592 = vadd.xlane.f32.xlu0 %v591
    %v593 = vpop.xlane.xlu0 %592
    %v594 = vsel %vm496, %v588, 0.0
    %595 = vadd.xlane.f32.xlu0 %v594
    %v596 = vpop.xlane.xlu0 %595
    %v597 = vxor.u32 %v593, 2147483648
    %v598 = vxor.u32 %v596, 2147483648
    %v599 = vmul.f32 %v597, 1.442695
    %v600 = vpow.pop %v599
    %v601 = vmul.f32 %v598, 1.442695
    %v602 = vpow.pop %v601
    %v603 = vadd.f32 %v600, 1.0
    %v604 = vadd.f32 %v602, 1.0
    %v605 = vrcp.pop %v603
    %v606 = vmul.f32 %v603, %v605
    %v607 = vsub.f32 1.0, %v606
    %v608 = vmul.f32 %v605, %v607
    %v609 = vadd.f32 %v605, %v608
    %vm610 = vweird.f32 %v603
    %vm611 = vweird.f32 %v605
    %vm612 = vmor %vm610, %vm611
    %v613 = vsel %vm612, %v605, %v609
    %v614 = vand.u32 2147483647, %v603
    %vm615 = vcmp.eq.f32.partialorder %v614, 8.507059e+37
    %v616 = vand.u32 %v603, 2147483648
    %v617 = vor.u32 1.1754944e-38, %v616
    %v618 = vsel %vm615, %v617, %v613
    %v619 = vmul.f32 1.0, %v618
    %v620 = vrcp.pop %v604
    %v621 = vmul.f32 %v604, %v620
    %v622 = vsub.f32 1.0, %v621
    %v623 = vmul.f32 %v620, %v622
    %v624 = vadd.f32 %v620, %v623
    %vm625 = vweird.f32 %v604
    %vm626 = vweird.f32 %v620
    %vm627 = vmor %vm625, %vm626
    %v628 = vsel %vm627, %v620, %v624
    %v629 = vand.u32 2147483647, %v604
    %vm630 = vcmp.eq.f32.partialorder %v629, 8.507059e+37
    %v631 = vand.u32 %v604, 2147483648
    %v632 = vor.u32 1.1754944e-38, %v631
    %v633 = vsel %vm630, %v632, %v628
    %v634 = vmul.f32 1.0, %v633
    %v635 = vmul.f32 %v443, %v619
    %v636 = vmul.f32 %v457, %v619
    %v637 = vmul.f32 %v445, %v634
    %v638 = vmul.f32 %v459, %v634
    %v639 = vadd.f32 %v635, %v306
    %v640 = vadd.f32 %v636, %v307
    %v641 = vadd.f32 %v637, %v310
    %v642 = vadd.f32 %v638, %v311
    %v643 = vmax.f32 %v639, 0.0
    %v644 = vmax.f32 %v640, 0.0
    %v645 = vmax.f32 %v641, 0.0
    %v646 = vmax.f32 %v642, 0.0
    %s647 = scalar_lea.vmem [#allocation5], 32
    %648 = vst [vmem:[%s647] sm:$0xff] %v643
    %649 = vst [vmem:[%s647 + $0x8] sm:$0xff] %v644
    %650 = vst [vmem:[%s647 + $0x10] sm:$0xff] %v645
    %651 = vst [vmem:[%s647 + $0x18] sm:$0xff] %v646
    // Predicated region
    $region18: #{tpu_custom_call.1} parent=1 // pred_check
      _
    $region19: #{tpu_custom_call.1} parent=1 // pred_check_branch
      %653 = sbr.rel (0) target = $region21
    $region20: #{tpu_custom_call.1} parent=1 // pred_region
      %655 = vsyncadd [#allocation4], 0
      %s656 = sshll.u32 [#allocation5], 4
      %s657 = int_to_ptr.vmem [resolvable:$true] %s656
      %s658 = sshll.u32 %s3, 4
      %s659 = int_to_ptr.hbm [resolvable:$true] %s658
      %664 = dma.vmem_to_hbm [thread:$0]  %s657, 1024, %s659, [#allocation4], 256, 256, 16
    $region21: #{tpu_custom_call.1} parent=1 // pred_fallthru
      _
    // Predicated region
    $region22: #{tpu_custom_call.1} parent=1 // pred_check
      _
    $region23: #{tpu_custom_call.1} parent=1 // pred_check_branch
      %666 = sbr.rel (0) target = $region25
    $region24: #{tpu_custom_call.1} parent=1 // pred_region
      %668 = dma.done [#allocation4], 1024
    $region25: #{tpu_custom_call.1} parent=1 // pred_fallthru
      _
    %669 = vsyncpa [#allocation3], 1
    %670 = vsyncpa [#allocation4], 1

</llo_original>
